<compile_context>
chip_gen: v7x
topology: tpu7x:2x2x1
jax: 0.10.0
libtpu: 0.0.40
codegen_flags: <defaults>
</compile_context>

<pallas_src>
import functools

import jax
import jax.numpy as jnp
from jax import lax
from jax.experimental import pallas as pl
from jax.experimental.pallas import tpu as pltpu


def _round_up(x: int, m: int) -> int:
    return (x + m - 1) // m * m


def _npair_loss_kernel(a_ref, p_ref, o_ref, *, n_actual: int, l2_reg: float):
    """One anchor-row tile per grid step; all positives stay resident.

    a_ref : (TM, D)     anchor row tile (native dtype, feeds MXU directly)
    p_ref : (N_pad, D)  all positives (constant block index -> fetched once)
    o_ref : (TM, 1) f32 per-anchor loss contributions (padded rows -> 0)
    """
    i = pl.program_id(0)
    tm = a_ref.shape[0]
    n_pad = p_ref.shape[0]

    a = a_ref[...]                # keep native dtype (bf16 runs MXU at full rate)
    p_all = p_ref[...]

    # sim[r, j] = anchor_r . positive_j ; contract dim 1 of both operands so
    # no transpose of the positives tile is materialized in the kernel.
    sim = lax.dot_general(a, p_all, (((1,), (1,)), ((), ())),
                          preferred_element_type=jnp.float32)      # (TM, N_pad)

    # correct_scores[r] = anchor_r . positive_r  (elementwise + row-reduce,
    # instead of an O(TM*N) diagonal extraction from sim).
    row0 = pl.multiple_of(i * tm, 8)
    p_tile = p_ref[pl.ds(row0, tm), :]
    diag = jnp.sum(a.astype(jnp.float32) * p_tile.astype(jnp.float32),
                   axis=1, keepdims=True)                           # (TM, 1)

    # log1p(sum_{j!=r} exp(.)) == log(sum_j exp(.)) since exp(0) = 1 on the
    # diagonal.  (Not max-stabilized, to keep exact equivalence with the
    # PyTorch module.)
    e = jnp.exp(sim - diag)                                         # (TM, N_pad)
    if n_pad > n_actual:
        # Padded (zero) positive columns would contribute exp(-diag); mask them.
        col = lax.broadcasted_iota(jnp.int32, e.shape, 1)
        e = jnp.where(col < n_actual, e, 0.0)
    per_row = jnp.log(jnp.sum(e, axis=1, keepdims=True))            # (TM, 1)

    if l2_reg > 0.0:
        a32 = a.astype(jnp.float32)
        p32 = p_tile.astype(jnp.float32)
        a_norm = jnp.sqrt(jnp.sum(a32 * a32, axis=1, keepdims=True))
        p_norm = jnp.sqrt(jnp.sum(p32 * p32, axis=1, keepdims=True))
        per_row = per_row + jnp.float32(0.5 * l2_reg) * (a_norm + p_norm)

    if n_pad > n_actual:
        # Padded anchor rows must not contribute to the mean.
        row = lax.broadcasted_iota(jnp.int32, per_row.shape, 0) + i * tm
        per_row = jnp.where(row < n_actual, per_row, 0.0)

    o_ref[...] = per_row


def npair_loss_direct(anchors, positives, l2_reg: float = 0.0, *,
                      tile_m: int = 256):
    """anchors, positives: (batch, embed_dim). Returns scalar f32 loss."""
    n, d = anchors.shape
    assert positives.shape == (n, d)

    # Row tile: multiple of 8 sublanes; whole (padded) batch if it is small.
    n8 = _round_up(n, 8)
    tm = n8 if n8 <= tile_m else tile_m
    n_pad = _round_up(n, tm)
    if n_pad != n:
        pad = n_pad - n
        anchors = jnp.pad(anchors, ((0, pad), (0, 0)))
        positives = jnp.pad(positives, ((0, pad), (0, 0)))
    num_tiles = n_pad // tm

    kernel = functools.partial(_npair_loss_kernel,
                               n_actual=n, l2_reg=float(l2_reg))
    itemsize = jnp.dtype(anchors.dtype).itemsize
    cost = pl.CostEstimate(
        flops=2 * n_pad * n_pad * d + 6 * n_pad * d,
        transcendentals=n_pad * n_pad + 2 * n_pad,
        bytes_accessed=2 * n_pad * d * itemsize + 4 * n_pad,
    )

    per_row = pl.pallas_call(
        kernel,
        out_shape=jax.ShapeDtypeStruct((n_pad, 1), jnp.float32),
        grid_spec=pltpu.PrefetchScalarGridSpec(
            num_scalar_prefetch=0,
            grid=(num_tiles,),
            in_specs=[
                pl.BlockSpec((tm, d), lambda i: (i, 0)),      # anchor row tile
                pl.BlockSpec((n_pad, d), lambda i: (0, 0)),   # positives resident
            ],
            out_specs=pl.BlockSpec((tm, 1), lambda i: (i, 0)),
        ),
        compiler_params=pltpu.CompilerParams(
            # Tiles are fully independent now -> megacore-shardable on v7x.
            dimension_semantics=("parallel",)),
        cost_estimate=cost,
    )(anchors, positives)

    # Tiny O(N) epilogue reduction stays in XLA (fuses into the surrounding
    # graph) so the kernel grid axis can remain "parallel".
    return jnp.sum(per_row) * (1.0 / n)


def _npair_loss_ref(anchors, positives, l2_reg: float = 0.0):
    """Pure-JAX reference mirroring the PyTorch module."""
    a = anchors.astype(jnp.float32)
    p = positives.astype(jnp.float32)
    n = a.shape[0]
    sim = a @ p.T
    diag = jnp.diag(sim)[:, None]
    diff = sim - diag
    mask = ~jnp.eye(n, dtype=bool)
    exp_off = jnp.where(mask, jnp.exp(diff), 0.0)
    loss = jnp.mean(jnp.log1p(jnp.sum(exp_off, axis=1)))
    if l2_reg > 0.0:
        l2_loss = (jnp.mean(jnp.linalg.norm(a, axis=1))
                   + jnp.mean(jnp.linalg.norm(p, axis=1))) / 2.0
        loss = loss + l2_reg * l2_loss
    return loss


if __name__ == "__main__":
    key = jax.random.PRNGKey(0)
    ka, kp = jax.random.split(key)
    batch, embed_dim = 8, 32
    anchors = jax.random.normal(ka, (batch, embed_dim), dtype=jnp.float32)
    positives = jax.random.normal(kp, (batch, embed_dim), dtype=jnp.float32)

    # Base case.
    loss = jax.block_until_ready(npair_loss_direct(anchors, positives, l2_reg=0.0))
    ref = _npair_loss_ref(anchors, positives, l2_reg=0.0)
    assert jnp.allclose(loss, ref, rtol=1e-4, atol=1e-4), (loss, ref)

    # With L2 regularization.
    loss_l2 = jax.block_until_ready(npair_loss_direct(anchors, positives, l2_reg=0.05))
    ref_l2 = _npair_loss_ref(anchors, positives, l2_reg=0.05)
    assert jnp.allclose(loss_l2, ref_l2, rtol=1e-4, atol=1e-4), (loss_l2, ref_l2)

    # Batch not a multiple of 8 (exercises the padding / mask path).
    kb, kq = jax.random.split(kp)
    anchors2 = jax.random.normal(kb, (12, embed_dim), dtype=jnp.float32)
    positives2 = jax.random.normal(kq, (12, embed_dim), dtype=jnp.float32)
    loss2 = jax.block_until_ready(npair_loss_direct(anchors2, positives2, l2_reg=0.0))
    ref2 = _npair_loss_ref(anchors2, positives2, l2_reg=0.0)
    assert jnp.allclose(loss2, ref2, rtol=1e-4, atol=1e-4), (loss2, ref2)

    # Multi-tile grid (num_tiles=3) with padding, exercising the parallel
    # anchor-tile axis + per-tile output path.
    kc, kd = jax.random.split(kq)
    anchors3 = jax.random.normal(kc, (20, 16), dtype=jnp.float32)
    positives3 = jax.random.normal(kd, (20, 16), dtype=jnp.float32)
    loss3 = jax.block_until_ready(
        npair_loss_direct(anchors3, positives3, l2_reg=0.01, tile_m=8))
    ref3 = _npair_loss_ref(anchors3, positives3, l2_reg=0.01)
    assert jnp.allclose(loss3, ref3, rtol=1e-4, atol=1e-4), (loss3, ref3)

    print("KERNEL_OK")
</pallas_src>

<mosaic_0001>
module attributes {stable_mosaic.version = 11 : i64} {
  func.func @_npair_loss_kernel(%arg0: i32, %arg1: memref<8x32xf32, #tpu.memory_space<vmem>>, %arg2: memref<8x32xf32, #tpu.memory_space<vmem>>, %arg3: memref<8x1xf32, #tpu.memory_space<vmem>>) attributes {dimension_semantics = [#tpu.dimension_semantics<parallel>], iteration_bounds = array<i64: 1>, scalar_prefetch = 0 : i64, scratch_operands = 0 : i64, tpu.core_type = #tpu.core_type<tc>, window_params = [{transform_indices = @transform_0, window_bounds = array<i64: 8, 32>}, {pipeline_mode = #tpu.pipeline_mode<synchronous>, transform_indices = @transform_1, window_bounds = array<i64: 8, 32>}, {transform_indices = @transform_2, window_bounds = array<i64: 8, 1>}]} {
    %c0 = arith.constant 0 : index
    %c0_0 = arith.constant 0 : index
    %0 = vector.load %arg1[%c0, %c0_0] : memref<8x32xf32, #tpu.memory_space<vmem>>, vector<8x32xf32>
    %c0_1 = arith.constant 0 : index
    %c0_2 = arith.constant 0 : index
    %1 = vector.load %arg2[%c0_1, %c0_2] : memref<8x32xf32, #tpu.memory_space<vmem>>, vector<8x32xf32>
    %cst = arith.constant dense<0.000000e+00> : vector<8x8xf32>
    %2 = tpu.matmul %0, %1, %cst {dimension_numbers = #tpu.dot_dimension_numbers<[1], [1], [0], [0], [0, 0, 1, 0], [], []>} : vector<8x32xf32>, vector<8x32xf32>, vector<8x8xf32> -> vector<8x8xf32>
    %c8_i32 = arith.constant 8 : i32
    %3 = arith.muli %arg0, %c8_i32 : i32
    %4 = tpu.assume_multiple %3, 8 : i32
    %5 = arith.index_cast %4 : i32 to index
    %c0_3 = arith.constant 0 : index
    %6 = vector.load %arg2[%5, %c0_3] : memref<8x32xf32, #tpu.memory_space<vmem>>, vector<8x32xf32>
    %7 = arith.mulf %0, %6 : vector<8x32xf32>
    %cst_4 = arith.constant dense<0.000000e+00> : vector<8xf32>
    %8 = vector.multi_reduction <add>, %7, %cst_4 [1] : vector<8x32xf32> to vector<8xf32>
    %9 = vector.shape_cast %8 : vector<8xf32> to vector<8x1xf32>
    %10 = vector.broadcast %9 : vector<8x1xf32> to vector<8x8xf32>
    %11 = arith.subf %2, %10 : vector<8x8xf32>
    %12 = math.exp %11 : vector<8x8xf32>
    %cst_5 = arith.constant dense<0.000000e+00> : vector<8xf32>
    %13 = vector.multi_reduction <add>, %12, %cst_5 [1] : vector<8x8xf32> to vector<8xf32>
    %14 = vector.shape_cast %13 : vector<8xf32> to vector<8x1xf32>
    %15 = math.log %14 : vector<8x1xf32>
    %c0_6 = arith.constant 0 : index
    %c0_7 = arith.constant 0 : index
    %16 = vector.load %arg3[%c0_6, %c0_7] : memref<8x1xf32, #tpu.memory_space<vmem>>, vector<8x1xf32>
    tpu.vector_store %arg3[%c0_6, %c0_7], %15 {strides = array<i32>} : memref<8x1xf32, #tpu.memory_space<vmem>>, vector<8x1xf32>,
    return
  }
  func.func @transform_0(%arg0: i32) -> (i32, i32) {
    %c0_i32 = arith.constant 0 : i32
    %c0_i32_0 = arith.constant 0 : i32
    return %arg0, %c0_i32 : i32, i32
  }
  func.func @transform_1(%arg0: i32) -> (i32, i32) {
    %c0_i32 = arith.constant 0 : i32
    %c0_i32_0 = arith.constant 0 : i32
    %c0_i32_1 = arith.constant 0 : i32
    return %c0_i32, %c0_i32_0 : i32, i32
  }
  func.func @transform_2(%arg0: i32) -> (i32, i32) {
    %c0_i32 = arith.constant 0 : i32
    %c0_i32_0 = arith.constant 0 : i32
    return %arg0, %c0_i32 : i32, i32
  }
}

</mosaic_0001>

<llo_original>
// kernel: tpu_custom_call.1
$region0: #{tpu_custom_call.1}
  #allocation0 [shape = 'u32[]', space=smem, size = 0x4, offset = 0x4, fixed_abs, tag = 'smem constant byte address 0x4 - core index']
  #allocation1 [shape = 'u32[144,128]{1,0:T(1,128)}', space=vmem, size = 0x12000, scoped, tag = 'internal scratch']
  %s0 = inlined_call_operand.hbm [shape: f32[8,32], index: 0, kind: input, shape index: {}]
  %s1 = inlined_call_operand.hbm [shape: f32[8,32], index: 1, kind: input, shape index: {}]
  %s2 = inlined_call_operand.vmem [shape: f32[8,1], index: 2, kind: output, shape index: {}]
  %s3 = sld [smem:[#allocation0]]
  $region26: #{tpu_custom_call.1} parent=0
    _
  %s5 = ssub.s32 1, %s3
  %s6 = scalar_select 0, %s5, %s3
  $region1: #{tpu_custom_call.1} parent=0
    #allocation2 [shape = 'u8[4096]{0}', space=vmem, size = 0x1000, scoped, tag = 'input window, operand 0, single buffered']
    #allocation3 [shape = 's32[1]{0}', space=sflag, size = 0x4, scoped, tag = 'scoped memory for tpu_custom_call.1']
    #allocation4 [shape = 'u8[4096]{0}', space=vmem, size = 0x1000, scoped, tag = 'input window, operand 1, single buffered']
    #allocation5 [shape = 's32[1]{0}', space=sflag, size = 0x4, scoped, tag = 'scoped memory for tpu_custom_call.1']
    %7 = vsyncpa [#allocation3], 0
    %8 = vsyncpa [#allocation5], 0
    // Predicated region
    $region2: #{tpu_custom_call.1} parent=1 // pred_check
      _
    $region3: #{tpu_custom_call.1} parent=1 // pred_check_branch
      %10 = sbr.rel (0) target = $region5
    $region4: #{tpu_custom_call.1} parent=1 // pred_region
      %s12 = ssub.s32 128, 128
      %13 = vsyncadd [#allocation3], %s12
      %s15 = sshll.u32 [#allocation2], 4
      %s16 = int_to_ptr.vmem [resolvable:$true] %s15
      %18 = dma.hbm_to_vmem [thread:$0]  %s0, 128, %s16, [#allocation3]
    $region5: #{tpu_custom_call.1} parent=1 // pred_fallthru
      _
    // Predicated region
    $region6: #{tpu_custom_call.1} parent=1 // pred_check
      _
    $region7: #{tpu_custom_call.1} parent=1 // pred_check_branch
      %20 = sbr.rel (0) target = $region9
    $region8: #{tpu_custom_call.1} parent=1 // pred_region
      %s22 = ssub.s32 128, 128
      %23 = vsyncadd [#allocation5], %s22
      %s25 = sshll.u32 [#allocation4], 4
      %s26 = int_to_ptr.vmem [resolvable:$true] %s25
      %28 = dma.hbm_to_vmem [thread:$0]  %s1, 128, %s26, [#allocation5]
    $region9: #{tpu_custom_call.1} parent=1 // pred_fallthru
      _
    // Predicated region
    $region10: #{tpu_custom_call.1} parent=1 // pred_check
      _
    $region11: #{tpu_custom_call.1} parent=1 // pred_check_branch
      %30 = sbr.rel (0) target = $region13
    $region12: #{tpu_custom_call.1} parent=1 // pred_region
      %31 = dma.done [#allocation3], 128
    $region13: #{tpu_custom_call.1} parent=1 // pred_fallthru
      _
    // Predicated region
    $region14: #{tpu_custom_call.1} parent=1 // pred_check
      _
    $region15: #{tpu_custom_call.1} parent=1 // pred_check_branch
      %33 = sbr.rel (0) target = $region17
    $region16: #{tpu_custom_call.1} parent=1 // pred_region
      %34 = dma.done [#allocation5], 128
    $region17: #{tpu_custom_call.1} parent=1 // pred_fallthru
      _
    %v35 = vld [vmem:[#allocation2] sm:$0xff]
    %v36 = vld [vmem:[#allocation4] sm:$0xff]
    %vm37 = vcmask 261120
    %v39 = vsel %vm37, %v35, 0
    %v42 = vsel %vm37, %v36, 0
    %44 = vmatprep.subr.mxu0 0.0
    %45 = vmatpush1.xpose.msra.mxu0 %v42
    %46 = vmatprep.subr.mxu0 0.0
    %47 = vmatpush1.xpose.msra.mxu0 0.0
    %48 = vmatprep.subr.mxu0 0.0
    %49 = vmatpush1.xpose.msra.mxu0 0.0
    %50 = vmatprep.subr.mxu0 0.0
    %51 = vmatpush1.xpose.msra.mxu0 0.0
    %52 = vmatprep.subr.mxu0 0.0
    %53 = vmatpush1.xpose.msra.mxu0 0.0
    %54 = vmatprep.subr.mxu0 0.0
    %55 = vmatpush1.xpose.msra.mxu0 0.0
    %56 = vmatprep.subr.mxu0 0.0
    %57 = vmatpush1.xpose.msra.mxu0 0.0
    %58 = vmatprep.subr.mxu0 0.0
    %59 = vmatpush1.xpose.msra.mxu0 0.0
    %60 = vmatprep.subr.mxu0 0.0
    %61 = vmatpush1.xpose.msra.mxu0 0.0
    %62 = vmatprep.subr.mxu0 0.0
    %63 = vmatpush1.xpose.msra.mxu0 0.0
    %64 = vmatprep.subr.mxu0 0.0
    %65 = vmatpush1.xpose.msra.mxu0 0.0
    %66 = vmatprep.subr.mxu0 0.0
    %67 = vmatpush1.xpose.msra.mxu0 0.0
    %68 = vmatprep.subr.mxu0 0.0
    %69 = vmatpush1.xpose.msra.mxu0 0.0
    %70 = vmatprep.subr.mxu0 0.0
    %71 = vmatpush1.xpose.msra.mxu0 0.0
    %72 = vmatprep.subr.mxu0 0.0
    %73 = vmatpush1.xpose.msra.mxu0 0.0
    %74 = vmatprep.subr.mxu0 0.0
    %75 = vmatpush1.xpose.msra.mxu0 0.0
    %76 = vmatprep.subr.mxu0 0.0
    %77 = vmatpush1.xpose.msra.mxu0 0.0
    %78 = vmatprep.subr.mxu0 0.0
    %79 = vmatpush1.xpose.msra.mxu0 0.0
    %80 = vmatprep.subr.mxu0 0.0
    %81 = vmatpush1.xpose.msra.mxu0 0.0
    %82 = vmatprep.subr.mxu0 0.0
    %83 = vmatpush1.xpose.msra.mxu0 0.0
    %84 = vmatprep.subr.mxu0 0.0
    %85 = vmatpush1.xpose.msra.mxu0 0.0
    %86 = vmatprep.subr.mxu0 0.0
    %87 = vmatpush1.xpose.msra.mxu0 0.0
    %88 = vmatprep.subr.mxu0 0.0
    %89 = vmatpush1.xpose.msra.mxu0 0.0
    %90 = vmatprep.subr.mxu0 0.0
    %91 = vmatpush1.xpose.msra.mxu0 0.0
    %92 = vmatprep.subr.mxu0 0.0
    %93 = vmatpush1.xpose.msra.mxu0 0.0
    %94 = vmatprep.subr.mxu0 0.0
    %95 = vmatpush1.xpose.msra.mxu0 0.0
    %96 = vmatprep.subr.mxu0 0.0
    %97 = vmatpush1.xpose.msra.mxu0 0.0
    %98 = vmatprep.subr.mxu0 0.0
    %99 = vmatpush1.xpose.msra.mxu0 0.0
    %100 = vmatprep.subr.mxu0 0.0
    %101 = vmatpush1.xpose.msra.mxu0 0.0
    %102 = vmatprep.subr.mxu0 0.0
    %103 = vmatpush1.xpose.msra.mxu0 0.0
    %104 = vmatprep.subr.mxu0 0.0
    %105 = vmatpush1.xpose.msra.mxu0 0.0
    %106 = vmatprep.subr.mxu0 0.0
    %107 = vmatpush1.xpose.msra.mxu0 0.0
    %108 = vmatprep.mubr.f32.mxu0 0.0
    %109 = vmatmul.mubr.f32.gmra.mrb[0].mxu0 %v39
    %v110 = vpop.f32.mrb[0].mxu0
    %v111 = vadd.f32 0.0, %v110
    %v112 = vpop.f32.mrb[0].mxu0
    %113 = vdwg.mxu0
    %s114 = smul.u32 0, 8
    %s115 = scalar_lea.vmem [#allocation4], %s114
    %v116 = vld [vmem:[%s115] sm:$0xff]
    %v117 = vmul.f32 %v35, %v116
    %v118 = vsel %vm37, %v117, 0.0
    %119 = vadd.xlane.f32.xlu0 %v118
    %v120 = vpop.xlane.xlu0 %119
    %v121 = vsub.f32 %v111, %v120
    %v122 = vmul.f32 %v121, 1.442695
    %v123 = vpow.pop %v122
    %vm124 = vcmask 64512
    %v125 = vsel %vm124, %v123, 0.0
    %126 = vadd.xlane.f32.xlu0 %v125
    %v127 = vpop.xlane.xlu0 %126
    %v128 = vlog2.pop %v127
    %v129 = vmul.f32 %v128, 0.6931472
    %vm130 = vcmask 7168
    %131 = vst.msk [vmem:[%s2] sm:$0xff] %vm130, %v129
    // Predicated region
    $region18: #{tpu_custom_call.1} parent=1 // pred_check
      _
    $region19: #{tpu_custom_call.1} parent=1 // pred_check_branch
      %133 = sbr.rel (0) target = $region21
    $region20: #{tpu_custom_call.1} parent=1 // pred_region
      _
    $region21: #{tpu_custom_call.1} parent=1 // pred_fallthru
      _
    // Predicated region
    $region22: #{tpu_custom_call.1} parent=1 // pred_check
      _
    $region23: #{tpu_custom_call.1} parent=1 // pred_check_branch
      %135 = sbr.rel (0) target = $region25
    $region24: #{tpu_custom_call.1} parent=1 // pred_region
      _
    $region25: #{tpu_custom_call.1} parent=1 // pred_fallthru
      _
    %136 = vsyncpa [#allocation3], 1
    %137 = vsyncpa [#allocation5], 1

</llo_original>
